<compile_context>
chip_gen: v7x
topology: tpu7x:2x2x1
jax: 0.10.0
libtpu: 0.0.40
codegen_flags: <defaults>
</compile_context>

<pallas_src>
import jax
import jax.numpy as jnp
from jax import lax
from jax.experimental import pallas as pl
from jax.experimental.pallas import tpu as pltpu


# ----------------------------------------------------------------------------
# Pallas kernel: one trajectory (batch element) per grid step.
# ----------------------------------------------------------------------------
def vae_fwd_kernel(
    scale_ref,   # (1, 1)        SMEM  scalar timewarper scale
    xs_ref,      # (T, D)        VMEM  one trajectory
    ts_ref,      # (T, 1)        VMEM
    eps_ref,     # (1, L)        VMEM
    wH_ref,      # (2D+L+4, H)   VMEM  H-wide param slab (see prepare_params)
    wL_ref,      # (2H+2, L)     VMEM  L-wide param slab (heads)
    bd2_ref,     # (D, 1)        VMEM  decoder output bias (column)
    # outputs (per trajectory)
    xT_ref,      # (D, T)        decoded trajectory, lane-dense on T
    mu_ref,      # (1, L)
    lv_ref,      # (1, L)
    z_ref,       # (1, L)
    sts_ref,     # (T, 1)        scaled_ts
):
    T, D = xs_ref.shape
    L = eps_ref.shape[1]
    H = wH_ref.shape[1]
    f32 = jnp.float32

    # Static row offsets into the H-wide slab (free static ref slices).
    o_wx = 0                 # enc_wx   (D, H)
    o_wt = D                 # enc_wt   (1, H)
    o_b1 = D + 1             # enc_b1   (1, H)
    o_wz = D + 2             # dec_wz   (L, H)
    o_dwt = D + 2 + L        # dec_wt   (1, H)
    o_db1 = D + 3 + L        # dec_b1   (1, H)
    o_w2t = D + 4 + L        # dec_w2^T (D, H)

    # --- scalar timewarper: scaled_ts = ts * scale --------------------------
    scale = scale_ref[0, 0]
    scaled = ts_ref[...] * scale                                  # (T, 1)
    sts_ref[...] = scaled

    # --- encoder: MXU matmul + rank-1 time term & bias on the VPU ----------
    enc_wx = wH_ref[o_wx:o_wx + D, :]                             # (D, H)
    enc_wt = wH_ref[o_wt:o_wt + 1, :]                             # (1, H)
    enc_b1 = wH_ref[o_b1:o_b1 + 1, :]                             # (1, H)
    pre = (jnp.dot(xs_ref[...], enc_wx, preferred_element_type=f32)
           + scaled * enc_wt + enc_b1)                            # (T, H)
    h_enc = jnp.tanh(pre)                                         # EUP

    # mean over T: exact in-kernel sublane reduction (no pooling matmul).
    pooled = jnp.mean(h_enc, axis=0, keepdims=True)               # (1, H)

    # --- mu / logvar heads: two small matmuls (no intra-vreg lane splits) ---
    enc_wmu = wL_ref[0:H, :]                                      # (H, L)
    enc_bmu = wL_ref[H:H + 1, :]                                  # (1, L)
    enc_wlv = wL_ref[H + 1:2 * H + 1, :]                          # (H, L)
    enc_blv = wL_ref[2 * H + 1:2 * H + 2, :]                      # (1, L)
    mu = jnp.dot(pooled, enc_wmu, preferred_element_type=f32) + enc_bmu
    logvar = jnp.dot(pooled, enc_wlv, preferred_element_type=f32) + enc_blv
    mu_ref[...] = mu
    lv_ref[...] = logvar

    # --- reparameterize: z = mu + eps * exp(0.5 * logvar) -------------------
    z = mu + eps_ref[...] * jnp.exp(0.5 * logvar)                 # (1, L)
    z_ref[...] = z

    # --- decoder -------------------------------------------------------------
    dec_wz = wH_ref[o_wz:o_wz + L, :]                             # (L, H)
    dec_wt = wH_ref[o_dwt:o_dwt + 1, :]                           # (1, H)
    dec_b1 = wH_ref[o_db1:o_db1 + 1, :]                           # (1, H)
    dec_w2t = wH_ref[o_w2t:o_w2t + D, :]                          # (D, H)

    hz = jnp.dot(z, dec_wz, preferred_element_type=f32)           # (1, H)
    # broadcast z-embedding over T + rank-1 time term: pure VPU, no matmul.
    h_dec = jnp.tanh(hz + scaled * dec_wt + dec_b1)               # (T, H)

    # lane-dense x: contract over H with h_dec as the transposed rhs -> (D, T)
    x_t = lax.dot_general(dec_w2t, h_dec,
                          dimension_numbers=(((1,), (1,)), ((), ())),
                          preferred_element_type=f32)             # (D, T)
    xT_ref[...] = x_t + bd2_ref[...]                              # + bias column


# ----------------------------------------------------------------------------
# Parameters (concrete instances of the abstract sub-modules)
# ----------------------------------------------------------------------------
def make_params(key, traj_dim, latent_dim, hidden):
    keys = jax.random.split(key, 10)
    s = 0.1
    return {
        "tw_scale": jnp.array([[1.5]], dtype=jnp.float32),
        "enc_wx": s * jax.random.normal(keys[0], (traj_dim, hidden), jnp.float32),
        "enc_wt": s * jax.random.normal(keys[1], (1, hidden), jnp.float32),
        "enc_b1": jnp.zeros((1, hidden), jnp.float32),
        "enc_wmu": s * jax.random.normal(keys[2], (hidden, latent_dim), jnp.float32),
        "enc_bmu": jnp.zeros((1, latent_dim), jnp.float32),
        "enc_wlv": s * jax.random.normal(keys[3], (hidden, latent_dim), jnp.float32),
        "enc_blv": jnp.zeros((1, latent_dim), jnp.float32),
        "dec_wz": s * jax.random.normal(keys[4], (latent_dim, hidden), jnp.float32),
        "dec_wt": s * jax.random.normal(keys[5], (1, hidden), jnp.float32),
        "dec_b1": jnp.zeros((1, hidden), jnp.float32),
        "dec_w2": s * jax.random.normal(keys[6], (hidden, traj_dim), jnp.float32),
        "dec_b2": jnp.zeros((1, traj_dim), jnp.float32),
    }


def prepare_params(params):
    """One-time parameter packing (runs OFF the per-call path).

    H-wide slab rows: [enc_wx(D); enc_wt(1); enc_b1(1); dec_wz(L); dec_wt(1);
                       dec_b1(1); dec_w2^T(D)]            -> (2D+L+4, H)
    L-wide slab rows: [enc_wmu(H); enc_bmu(1); enc_wlv(H); enc_blv(1)]
                                                           -> (2H+2, L)
    """
    wH = jnp.concatenate(
        [params["enc_wx"], params["enc_wt"], params["enc_b1"],
         params["dec_wz"], params["dec_wt"], params["dec_b1"],
         params["dec_w2"].T], axis=0)
    wL = jnp.concatenate(
        [params["enc_wmu"], params["enc_bmu"],
         params["enc_wlv"], params["enc_blv"]], axis=0)
    bd2 = params["dec_b2"].T                                   # (D, 1)
    return {"scale": params["tw_scale"], "wH": wH, "wL": wL, "bd2": bd2}


# ----------------------------------------------------------------------------
# Wrapper: one pallas_call, grid over the batch axis (parallel).
# ----------------------------------------------------------------------------
@jax.jit
def vae_forward(xs, ts, eps, prep):
    B, T, D = xs.shape
    L = eps.shape[1]
    f32 = jnp.float32

    eps3 = eps.reshape(B, 1, L)          # metadata reshape only
    wH, wL, bd2, scale = prep["wH"], prep["wL"], prep["bd2"], prep["scale"]

    out_shape = (
        jax.ShapeDtypeStruct((B, D, T), f32),   # x, transposed (lane-dense on T)
        jax.ShapeDtypeStruct((B, 1, L), f32),   # mu
        jax.ShapeDtypeStruct((B, 1, L), f32),   # logvar
        jax.ShapeDtypeStruct((B, 1, L), f32),   # z
        jax.ShapeDtypeStruct((B, T, 1), f32),   # scaled_ts
    )

    fn = pl.pallas_call(
        vae_fwd_kernel,
        grid=(B,),
        out_shape=out_shape,
        in_specs=[
            pl.BlockSpec(memory_space=pltpu.MemorySpace.SMEM),        # scale (1,1)
            pl.BlockSpec((None, T, D), lambda b: (b, 0, 0)),          # xs
            pl.BlockSpec((None, T, 1), lambda b: (b, 0, 0)),          # ts
            pl.BlockSpec((None, 1, L), lambda b: (b, 0, 0)),          # eps
            pl.BlockSpec(wH.shape, lambda b: (0, 0)),                 # H-wide slab
            pl.BlockSpec(wL.shape, lambda b: (0, 0)),                 # L-wide slab
            pl.BlockSpec(bd2.shape, lambda b: (0, 0)),                # dec_b2 col
        ],
        out_specs=(
            pl.BlockSpec((None, D, T), lambda b: (b, 0, 0)),
            pl.BlockSpec((None, 1, L), lambda b: (b, 0, 0)),
            pl.BlockSpec((None, 1, L), lambda b: (b, 0, 0)),
            pl.BlockSpec((None, 1, L), lambda b: (b, 0, 0)),
            pl.BlockSpec((None, T, 1), lambda b: (b, 0, 0)),
        ),
        compiler_params=pltpu.CompilerParams(
            dimension_semantics=("parallel",),
            vmem_limit_bytes=32 * 1024 * 1024,
        ),
    )
    x_t, mu3, lv3, z3, scaled_ts = fn(scale, xs, ts, eps3, wH, wL, bd2)

    # Module-shape plumbing (a layout-aware consumer would keep (B, D, T)).
    x = jnp.swapaxes(x_t, 1, 2)                                  # (B, T, D)
    return x, mu3.reshape(B, L), lv3.reshape(B, L), z3.reshape(B, L), scaled_ts


def vae_forward_ref(xs, ts, eps, params):
    """Pure-JAX reference mirroring the module math (correctness check)."""
    scaled = ts * params["tw_scale"][0, 0]
    h = jnp.tanh(jnp.einsum("btd,dh->bth", xs, params["enc_wx"])
                 + scaled * params["enc_wt"][None]
                 + params["enc_b1"][None])
    pooled = jnp.mean(h, axis=1)
    mu = pooled @ params["enc_wmu"] + params["enc_bmu"]
    logvar = pooled @ params["enc_wlv"] + params["enc_blv"]
    z = mu + eps * jnp.exp(0.5 * logvar)
    hd = jnp.tanh((z @ params["dec_wz"])[:, None, :]
                  + scaled * params["dec_wt"][None]
                  + params["dec_b1"][None])
    x = jnp.einsum("bth,hd->btd", hd, params["dec_w2"]) + params["dec_b2"][None]
    return x, mu, logvar, z, scaled


if __name__ == "__main__":
    # Small shapes consistent with the module's forward signature.
    B, T, D = 2, 8, 4          # batch, traj_len, traj_dim
    L, H = 8, 32               # latent_dim, hidden width

    key = jax.random.PRNGKey(0)
    k_xs, k_ts, k_eps, k_par = jax.random.split(key, 4)

    xs = jax.random.normal(k_xs, (B, T, D), jnp.float32)
    ts = jax.random.uniform(k_ts, (B, T, 1), jnp.float32)

    # reparameterize: eps ~ N(0,1); default VAE config (no force_autoencoder,
    # no rate-invariant flag) => only_perturb_after_index = 0, nothing zeroed.
    only_perturb_after_index = 0
    eps = jax.random.normal(k_eps, (B, L), jnp.float32)
    eps = eps.at[:, :only_perturb_after_index].set(0.0)

    params = make_params(k_par, D, L, H)
    prep = prepare_params(params)      # one-time packing, off the hot path

    outs = vae_forward(xs, ts, eps, prep)
    outs = jax.block_until_ready(outs)
    x_k, mu_k, lv_k, z_k, st_k = outs

    # Correctness check against the pure-JAX reference.
    x_r, mu_r, lv_r, z_r, st_r = vae_forward_ref(xs, ts, eps, params)
    for a, b in zip((x_k, mu_k, lv_k, z_k, st_k), (x_r, mu_r, lv_r, z_r, st_r)):
        assert a.shape == b.shape and a.dtype == b.dtype
        assert jnp.max(jnp.abs(a - b)) < 1e-4

    print("KERNEL_OK")
</pallas_src>

<mosaic_0001>
module attributes {stable_mosaic.version = 11 : i64} {
  func.func @vae_fwd_kernel(%arg0: i32, %arg1: memref<1x1xf32, #tpu.memory_space<smem>>, %arg2: memref<1x8x4xf32, #tpu.memory_space<vmem>>, %arg3: memref<1x8x1xf32, #tpu.memory_space<vmem>>, %arg4: memref<1x1x8xf32, #tpu.memory_space<vmem>>, %arg5: memref<20x32xf32, #tpu.memory_space<vmem>>, %arg6: memref<66x8xf32, #tpu.memory_space<vmem>>, %arg7: memref<4x1xf32, #tpu.memory_space<vmem>>, %arg8: memref<1x4x8xf32, #tpu.memory_space<vmem>>, %arg9: memref<1x1x8xf32, #tpu.memory_space<vmem>>, %arg10: memref<1x1x8xf32, #tpu.memory_space<vmem>>, %arg11: memref<1x1x8xf32, #tpu.memory_space<vmem>>, %arg12: memref<1x8x1xf32, #tpu.memory_space<vmem>>) attributes {dimension_semantics = [#tpu.dimension_semantics<parallel>], iteration_bounds = array<i64: 2>, scalar_prefetch = 0 : i64, scratch_operands = 0 : i64, tpu.core_type = #tpu.core_type<tc>, window_params = [{transform_indices = @transform_0, window_bounds = array<i64: 1, 1>}, {transform_indices = @transform_1, window_bounds = array<i64: 1, 8, 4>}, {transform_indices = @transform_2, window_bounds = array<i64: 1, 8, 1>}, {transform_indices = @transform_3, window_bounds = array<i64: 1, 1, 8>}, {pipeline_mode = #tpu.pipeline_mode<synchronous>, transform_indices = @transform_4, window_bounds = array<i64: 20, 32>}, {pipeline_mode = #tpu.pipeline_mode<synchronous>, transform_indices = @transform_5, window_bounds = array<i64: 66, 8>}, {pipeline_mode = #tpu.pipeline_mode<synchronous>, transform_indices = @transform_6, window_bounds = array<i64: 4, 1>}, {transform_indices = @transform_7, window_bounds = array<i64: 1, 4, 8>}, {transform_indices = @transform_8, window_bounds = array<i64: 1, 1, 8>}, {transform_indices = @transform_9, window_bounds = array<i64: 1, 1, 8>}, {transform_indices = @transform_10, window_bounds = array<i64: 1, 1, 8>}, {transform_indices = @transform_11, window_bounds = array<i64: 1, 8, 1>}]} {
    %c0 = arith.constant 0 : index
    %c0_0 = arith.constant 0 : index
    %0 = memref.load %arg1[%c0, %c0_0] : memref<1x1xf32, #tpu.memory_space<smem>>
    %c0_1 = arith.constant 0 : index
    %c0_2 = arith.constant 0 : index
    %c0_3 = arith.constant 0 : index
    %1 = vector.load %arg3[%c0_1, %c0_2, %c0_3] : memref<1x8x1xf32, #tpu.memory_space<vmem>>, vector<1x8x1xf32>
    %2 = vector.shape_cast %1 : vector<1x8x1xf32> to vector<8x1xf32>
    %3 = vector.broadcast %0 : f32 to vector<8x1xf32>
    %4 = arith.mulf %2, %3 : vector<8x1xf32>
    %c0_4 = arith.constant 0 : index
    %c0_5 = arith.constant 0 : index
    %c0_6 = arith.constant 0 : index
    %5 = vector.load %arg12[%c0_4, %c0_5, %c0_6] : memref<1x8x1xf32, #tpu.memory_space<vmem>>, vector<1x8x1xf32>
    %6 = vector.shape_cast %5 : vector<1x8x1xf32> to vector<8x1xf32>
    %7 = vector.shape_cast %4 : vector<8x1xf32> to vector<1x8x1xf32>
    tpu.vector_store %arg12[%c0_4, %c0_5, %c0_6], %7 {strides = array<i32>} : memref<1x8x1xf32, #tpu.memory_space<vmem>>, vector<1x8x1xf32>,
    %c0_7 = arith.constant 0 : index
    %c0_8 = arith.constant 0 : index
    %8 = vector.load %arg5[%c0_7, %c0_8] : memref<20x32xf32, #tpu.memory_space<vmem>>, vector<4x32xf32>
    %c4 = arith.constant 4 : index
    %c0_9 = arith.constant 0 : index
    %9 = vector.load %arg5[%c4, %c0_9] : memref<20x32xf32, #tpu.memory_space<vmem>>, vector<1x32xf32>
    %c5 = arith.constant 5 : index
    %c0_10 = arith.constant 0 : index
    %10 = vector.load %arg5[%c5, %c0_10] : memref<20x32xf32, #tpu.memory_space<vmem>>, vector<1x32xf32>
    %c0_11 = arith.constant 0 : index
    %c0_12 = arith.constant 0 : index
    %c0_13 = arith.constant 0 : index
    %11 = vector.load %arg2[%c0_11, %c0_12, %c0_13] : memref<1x8x4xf32, #tpu.memory_space<vmem>>, vector<1x8x4xf32>
    %12 = vector.shape_cast %11 : vector<1x8x4xf32> to vector<8x4xf32>
    %cst = arith.constant dense<0.000000e+00> : vector<8x32xf32>
    %13 = tpu.matmul %12, %8, %cst {dimension_numbers = #tpu.dot_dimension_numbers<[1], [0], [0], [1], [0, 0, 1, 1], [], []>} : vector<8x4xf32>, vector<4x32xf32>, vector<8x32xf32> -> vector<8x32xf32>
    %14 = vector.broadcast %4 : vector<8x1xf32> to vector<8x32xf32>
    %15 = vector.broadcast %9 : vector<1x32xf32> to vector<8x32xf32>
    %16 = arith.mulf %14, %15 : vector<8x32xf32>
    %17 = arith.addf %13, %16 : vector<8x32xf32>
    %18 = vector.broadcast %10 : vector<1x32xf32> to vector<8x32xf32>
    %19 = arith.addf %17, %18 : vector<8x32xf32>
    %20 = math.tanh %19 : vector<8x32xf32>
    %cst_14 = arith.constant dense<0.000000e+00> : vector<32xf32>
    %21 = vector.multi_reduction <add>, %20, %cst_14 [0] : vector<8x32xf32> to vector<32xf32>
    %22 = vector.shape_cast %21 : vector<32xf32> to vector<1x32xf32>
    %cst_15 = arith.constant 8.000000e+00 : f32
    %23 = vector.broadcast %cst_15 : f32 to vector<1x32xf32>
    %24 = arith.divf %22, %23 : vector<1x32xf32>
    %c0_16 = arith.constant 0 : index
    %c0_17 = arith.constant 0 : index
    %25 = vector.load %arg6[%c0_16, %c0_17] : memref<66x8xf32, #tpu.memory_space<vmem>>, vector<32x8xf32>
    %c32 = arith.constant 32 : index
    %c0_18 = arith.constant 0 : index
    %26 = vector.load %arg6[%c32, %c0_18] : memref<66x8xf32, #tpu.memory_space<vmem>>, vector<1x8xf32>
    %c33 = arith.constant 33 : index
    %c0_19 = arith.constant 0 : index
    %27 = vector.load %arg6[%c33, %c0_19] : memref<66x8xf32, #tpu.memory_space<vmem>>, vector<32x8xf32>
    %c65 = arith.constant 65 : index
    %c0_20 = arith.constant 0 : index
    %28 = vector.load %arg6[%c65, %c0_20] : memref<66x8xf32, #tpu.memory_space<vmem>>, vector<1x8xf32>
    %cst_21 = arith.constant dense<0.000000e+00> : vector<1x8xf32>
    %29 = tpu.matmul %24, %25, %cst_21 {dimension_numbers = #tpu.dot_dimension_numbers<[1], [0], [0], [1], [0, 0, 1, 1], [], []>} : vector<1x32xf32>, vector<32x8xf32>, vector<1x8xf32> -> vector<1x8xf32>
    %30 = arith.addf %29, %26 : vector<1x8xf32>
    %cst_22 = arith.constant dense<0.000000e+00> : vector<1x8xf32>
    %31 = tpu.matmul %24, %27, %cst_22 {dimension_numbers = #tpu.dot_dimension_numbers<[1], [0], [0], [1], [0, 0, 1, 1], [], []>} : vector<1x32xf32>, vector<32x8xf32>, vector<1x8xf32> -> vector<1x8xf32>
    %32 = arith.addf %31, %28 : vector<1x8xf32>
    %c0_23 = arith.constant 0 : index
    %c0_24 = arith.constant 0 : index
    %c0_25 = arith.constant 0 : index
    %33 = vector.load %arg9[%c0_23, %c0_24, %c0_25] : memref<1x1x8xf32, #tpu.memory_space<vmem>>, vector<1x1x8xf32>
    %34 = vector.shape_cast %33 : vector<1x1x8xf32> to vector<1x8xf32>
    %35 = vector.shape_cast %30 : vector<1x8xf32> to vector<1x1x8xf32>
    tpu.vector_store %arg9[%c0_23, %c0_24, %c0_25], %35 {strides = array<i32>} : memref<1x1x8xf32, #tpu.memory_space<vmem>>, vector<1x1x8xf32>,
    %c0_26 = arith.constant 0 : index
    %c0_27 = arith.constant 0 : index
    %c0_28 = arith.constant 0 : index
    %36 = vector.load %arg10[%c0_26, %c0_27, %c0_28] : memref<1x1x8xf32, #tpu.memory_space<vmem>>, vector<1x1x8xf32>
    %37 = vector.shape_cast %36 : vector<1x1x8xf32> to vector<1x8xf32>
    %38 = vector.shape_cast %32 : vector<1x8xf32> to vector<1x1x8xf32>
    tpu.vector_store %arg10[%c0_26, %c0_27, %c0_28], %38 {strides = array<i32>} : memref<1x1x8xf32, #tpu.memory_space<vmem>>, vector<1x1x8xf32>,
    %c0_29 = arith.constant 0 : index
    %c0_30 = arith.constant 0 : index
    %c0_31 = arith.constant 0 : index
    %39 = vector.load %arg4[%c0_29, %c0_30, %c0_31] : memref<1x1x8xf32, #tpu.memory_space<vmem>>, vector<1x1x8xf32>
    %40 = vector.shape_cast %39 : vector<1x1x8xf32> to vector<1x8xf32>
    %cst_32 = arith.constant 5.000000e-01 : f32
    %41 = vector.broadcast %cst_32 : f32 to vector<1x8xf32>
    %42 = arith.mulf %41, %32 : vector<1x8xf32>
    %43 = math.exp %42 : vector<1x8xf32>
    %44 = arith.mulf %40, %43 : vector<1x8xf32>
    %45 = arith.addf %30, %44 : vector<1x8xf32>
    %c0_33 = arith.constant 0 : index
    %c0_34 = arith.constant 0 : index
    %c0_35 = arith.constant 0 : index
    %46 = vector.load %arg11[%c0_33, %c0_34, %c0_35] : memref<1x1x8xf32, #tpu.memory_space<vmem>>, vector<1x1x8xf32>
    %47 = vector.shape_cast %46 : vector<1x1x8xf32> to vector<1x8xf32>
    %48 = vector.shape_cast %45 : vector<1x8xf32> to vector<1x1x8xf32>
    tpu.vector_store %arg11[%c0_33, %c0_34, %c0_35], %48 {strides = array<i32>} : memref<1x1x8xf32, #tpu.memory_space<vmem>>, vector<1x1x8xf32>,
    %c6 = arith.constant 6 : index
    %c0_36 = arith.constant 0 : index
    %49 = vector.load %arg5[%c6, %c0_36] : memref<20x32xf32, #tpu.memory_space<vmem>>, vector<8x32xf32>
    %c14 = arith.constant 14 : index
    %c0_37 = arith.constant 0 : index
    %50 = vector.load %arg5[%c14, %c0_37] : memref<20x32xf32, #tpu.memory_space<vmem>>, vector<1x32xf32>
    %c15 = arith.constant 15 : index
    %c0_38 = arith.constant 0 : index
    %51 = vector.load %arg5[%c15, %c0_38] : memref<20x32xf32, #tpu.memory_space<vmem>>, vector<1x32xf32>
    %c16 = arith.constant 16 : index
    %c0_39 = arith.constant 0 : index
    %52 = vector.load %arg5[%c16, %c0_39] : memref<20x32xf32, #tpu.memory_space<vmem>>, vector<4x32xf32>
    %cst_40 = arith.constant dense<0.000000e+00> : vector<1x32xf32>
    %53 = tpu.matmul %45, %49, %cst_40 {dimension_numbers = #tpu.dot_dimension_numbers<[1], [0], [0], [1], [0, 0, 1, 1], [], []>} : vector<1x8xf32>, vector<8x32xf32>, vector<1x32xf32> -> vector<1x32xf32>
    %54 = vector.broadcast %4 : vector<8x1xf32> to vector<8x32xf32>
    %55 = vector.broadcast %50 : vector<1x32xf32> to vector<8x32xf32>
    %56 = arith.mulf %54, %55 : vector<8x32xf32>
    %57 = vector.broadcast %53 : vector<1x32xf32> to vector<8x32xf32>
    %58 = arith.addf %57, %56 : vector<8x32xf32>
    %59 = vector.broadcast %51 : vector<1x32xf32> to vector<8x32xf32>
    %60 = arith.addf %58, %59 : vector<8x32xf32>
    %61 = math.tanh %60 : vector<8x32xf32>
    %cst_41 = arith.constant dense<0.000000e+00> : vector<4x8xf32>
    %62 = tpu.matmul %52, %61, %cst_41 {dimension_numbers = #tpu.dot_dimension_numbers<[1], [1], [0], [0], [0, 0, 1, 0], [], []>} : vector<4x32xf32>, vector<8x32xf32>, vector<4x8xf32> -> vector<4x8xf32>
    %c0_42 = arith.constant 0 : index
    %c0_43 = arith.constant 0 : index
    %63 = vector.load %arg7[%c0_42, %c0_43] : memref<4x1xf32, #tpu.memory_space<vmem>>, vector<4x1xf32>
    %64 = vector.broadcast %63 : vector<4x1xf32> to vector<4x8xf32>
    %65 = arith.addf %62, %64 : vector<4x8xf32>
    %c0_44 = arith.constant 0 : index
    %c0_45 = arith.constant 0 : index
    %c0_46 = arith.constant 0 : index
    %66 = vector.load %arg8[%c0_44, %c0_45, %c0_46] : memref<1x4x8xf32, #tpu.memory_space<vmem>>, vector<1x4x8xf32>
    %67 = vector.shape_cast %66 : vector<1x4x8xf32> to vector<4x8xf32>
    %68 = vector.shape_cast %65 : vector<4x8xf32> to vector<1x4x8xf32>
    tpu.vector_store %arg8[%c0_44, %c0_45, %c0_46], %68 {strides = array<i32>} : memref<1x4x8xf32, #tpu.memory_space<vmem>>, vector<1x4x8xf32>,
    return
  }
  func.func @transform_0(%arg0: i32) -> (i32, i32) {
    %c0_i32 = arith.constant 0 : i32
    %c0_i32_0 = arith.constant 0 : i32
    %c0_i32_1 = arith.constant 0 : i32
    return %c0_i32, %c0_i32_0 : i32, i32
  }
  func.func @transform_1(%arg0: i32) -> (i32, i32, i32) {
    %c0_i32 = arith.constant 0 : i32
    %c0_i32_0 = arith.constant 0 : i32
    %c0_i32_1 = arith.constant 0 : i32
    return %arg0, %c0_i32, %c0_i32_0 : i32, i32, i32
  }
  func.func @transform_2(%arg0: i32) -> (i32, i32, i32) {
    %c0_i32 = arith.constant 0 : i32
    %c0_i32_0 = arith.constant 0 : i32
    %c0_i32_1 = arith.constant 0 : i32
    return %arg0, %c0_i32, %c0_i32_0 : i32, i32, i32
  }
  func.func @transform_3(%arg0: i32) -> (i32, i32, i32) {
    %c0_i32 = arith.constant 0 : i32
    %c0_i32_0 = arith.constant 0 : i32
    %c0_i32_1 = arith.constant 0 : i32
    return %arg0, %c0_i32, %c0_i32_0 : i32, i32, i32
  }
  func.func @transform_4(%arg0: i32) -> (i32, i32) {
    %c0_i32 = arith.constant 0 : i32
    %c0_i32_0 = arith.constant 0 : i32
    %c0_i32_1 = arith.constant 0 : i32
    return %c0_i32, %c0_i32_0 : i32, i32
  }
  func.func @transform_5(%arg0: i32) -> (i32, i32) {
    %c0_i32 = arith.constant 0 : i32
    %c0_i32_0 = arith.constant 0 : i32
    %c0_i32_1 = arith.constant 0 : i32
    return %c0_i32, %c0_i32_0 : i32, i32
  }
  func.func @transform_6(%arg0: i32) -> (i32, i32) {
    %c0_i32 = arith.constant 0 : i32
    %c0_i32_0 = arith.constant 0 : i32
    %c0_i32_1 = arith.constant 0 : i32
    return %c0_i32, %c0_i32_0 : i32, i32
  }
  func.func @transform_7(%arg0: i32) -> (i32, i32, i32) {
    %c0_i32 = arith.constant 0 : i32
    %c0_i32_0 = arith.constant 0 : i32
    %c0_i32_1 = arith.constant 0 : i32
    return %arg0, %c0_i32, %c0_i32_0 : i32, i32, i32
  }
  func.func @transform_8(%arg0: i32) -> (i32, i32, i32) {
    %c0_i32 = arith.constant 0 : i32
    %c0_i32_0 = arith.constant 0 : i32
    %c0_i32_1 = arith.constant 0 : i32
    return %arg0, %c0_i32, %c0_i32_0 : i32, i32, i32
  }
  func.func @transform_9(%arg0: i32) -> (i32, i32, i32) {
    %c0_i32 = arith.constant 0 : i32
    %c0_i32_0 = arith.constant 0 : i32
    %c0_i32_1 = arith.constant 0 : i32
    return %arg0, %c0_i32, %c0_i32_0 : i32, i32, i32
  }
  func.func @transform_10(%arg0: i32) -> (i32, i32, i32) {
    %c0_i32 = arith.constant 0 : i32
    %c0_i32_0 = arith.constant 0 : i32
    %c0_i32_1 = arith.constant 0 : i32
    return %arg0, %c0_i32, %c0_i32_0 : i32, i32, i32
  }
  func.func @transform_11(%arg0: i32) -> (i32, i32, i32) {
    %c0_i32 = arith.constant 0 : i32
    %c0_i32_0 = arith.constant 0 : i32
    %c0_i32_1 = arith.constant 0 : i32
    return %arg0, %c0_i32, %c0_i32_0 : i32, i32, i32
  }
}

</mosaic_0001>

<llo_original>
// kernel: vae_forward.1
$region0: #{vae_forward.1}
  #allocation0 [shape = 'u32[]', space=smem, size = 0x4, offset = 0x4, fixed_abs, tag = 'smem constant byte address 0x4 - core index']
  #allocation1 [shape = 'u32[144,128]{1,0:T(1,128)}', space=vmem, size = 0x12000, scoped, tag = 'internal scratch']
  #allocation2 [shape = 'f32[1,1]{1,0:T(1,128)S(6)}', space=smem, size = 0x200, scoped, tag = 'scoped memory for vae_forward.1']
  %s0 = inlined_call_operand.<no memory space> [shape: f32[1,1], index: 0, kind: input, shape index: {}]
  %s1 = inlined_call_operand.vmem [shape: f32[2,8,4], index: 1, kind: input, shape index: {}]
  %s2 = inlined_call_operand.vmem [shape: f32[2,8,1], index: 2, kind: input, shape index: {}]
  %s3 = inlined_call_operand.vmem [shape: f32[2,1,8], index: 3, kind: input, shape index: {}]
  %s4 = inlined_call_operand.vmem [shape: f32[20,32], index: 4, kind: input, shape index: {}]
  %s5 = inlined_call_operand.vmem [shape: f32[66,8], index: 5, kind: input, shape index: {}]
  %s6 = inlined_call_operand.vmem [shape: f32[4,1], index: 6, kind: input, shape index: {}]
  %s7 = inlined_call_operand.hbm [shape: f32[2,4,8], index: 7, kind: output, shape index: {0}]
  %s8 = inlined_call_operand.hbm [shape: f32[2,1,8], index: 8, kind: output, shape index: {1}]
  %s9 = inlined_call_operand.hbm [shape: f32[2,1,8], index: 9, kind: output, shape index: {2}]
  %s10 = inlined_call_operand.hbm [shape: f32[2,1,8], index: 10, kind: output, shape index: {3}]
  %s11 = inlined_call_operand.vmem [shape: f32[2,8,1], index: 11, kind: output, shape index: {4}]
  %12 = xla_tuple %s7, %s8, %s9, %s10, %s11
  %s13 = sld [smem:[#allocation0]]
  $region93: #{vae_forward.1} parent=0
    _
  %s15 = ssub.s32 1, %s13
  %s16 = scalar_select 0, %s15, %s13
  %17 = sst [smem:[#allocation2]] %s0
  $region1: #{vae_forward.1} parent=0
    #allocation3 [shape = 'u8[4096]{0}', space=vmem, size = 0x1000, scoped, tag = 'output window, operand 0']
    #allocation4 [shape = 's32[2]{0}', space=sflag, size = 0x8, scoped, tag = 'scoped memory for vae_forward.1']
    #allocation5 [shape = 'u8[1024]{0}', space=vmem, size = 0x400, scoped, tag = 'output window, operand 1']
    #allocation6 [shape = 's32[2]{0}', space=sflag, size = 0x8, scoped, tag = 'scoped memory for vae_forward.1']
    #allocation7 [shape = 'u8[1024]{0}', space=vmem, size = 0x400, scoped, tag = 'output window, operand 2']
    #allocation8 [shape = 'u8[1024]{0}', space=vmem, size = 0x400, scoped, tag = 'output window, operand 3']
    #allocation9 [shape = 's32[2]{0}', space=sflag, size = 0x8, scoped, tag = 'scoped memory for vae_forward.1']
    %18 = vsyncpa [#allocation4], 0
    %s19 = scalar_lea.sflag [#allocation4], 1
    %20 = vsyncpa %s19, 0
    %21 = vsyncpa [#allocation6], 0
    %s22 = scalar_lea.sflag [#allocation6], 1
    %23 = vsyncpa %s22, 0
    %24 = vsyncpa [#allocation9], 0
    %s25 = scalar_lea.sflag [#allocation9], 1
    %26 = vsyncpa %s25, 0
    loop: start=0, step=1, limit=4
    $region2: #{vae_forward.1} parent=1 // loop_pre_header
      _
    $region3: #{vae_forward.1} parent=1 // loop_header
      %s28 = sphi 0, %s32
      %p29 = scmp.ge.s32.totalorder %s28, 4
      %s36 = sphi 0, %s36
      %s38 = sphi 0, %s36
      %s39 = sphi 0, %s38
      %s53 = sphi 0, %s39
      %s59 = sphi 0, %s61
      %s62 = sphi 0, %s59
      %s63 = sphi 0, %s62
      %s79 = sphi 0, %s63
      %s85 = sphi 0, %s87
      %s88 = sphi 0, %s85
      %s89 = sphi 0, %s88
      %s105 = sphi 0, %s89
      %s111 = sphi 0, %s113
      %s114 = sphi 0, %s111
      %s115 = sphi 0, %s114
      %s131 = sphi 0, %s115
      %s135 = sphi 0, %s135
      %s137 = sphi 0, %s135
      %s138 = sphi 0, %s137
      %s152 = sphi 0, %s138
      %s156 = sphi 0, %s156
      %s158 = sphi 0, %s156
      %s159 = sphi 0, %s158
      %s173 = sphi 0, %s159
      %s177 = sphi 0, %s177
      %s179 = sphi 0, %s177
      %s180 = sphi 0, %s179
      %s194 = sphi 0, %s180
      %s200 = sphi 0, %s202
      %s203 = sphi 0, %s200
      %s204 = sphi 0, %s203
      %s220 = sphi 0, %s204
      %s226 = sphi 0, %s228
      %s229 = sphi 0, %s226
      %s230 = sphi 0, %s229
      %s246 = sphi 0, %s230
      %s252 = sphi 0, %s254
      %s255 = sphi 0, %s252
      %s256 = sphi 0, %s255
      %s272 = sphi 0, %s256
      %s278 = sphi 0, %s280
      %s281 = sphi 0, %s278
      %s282 = sphi 0, %s281
      %s298 = sphi 0, %s282
      %s304 = sphi 0, %s306
      %s307 = sphi 0, %s304
      %s308 = sphi 0, %s307
      %s324 = sphi 0, %s308
    $region4: #{vae_forward.1} parent=1 // loop_header_branch
      %31 = sbr.rel (%p29) target = $region8
    $region5: #{vae_forward.1} parent=1 // loop_body
      %s33 = ssub.s32 %s28, 1
      %s34 = ssub.s32 %s28, 2
      %s35 = sadd.s32 %s28, 1
      %s37 = sadd.s32 %s36, 1
      %p40 = scmp.eq.s32.totalorder %s28, 1
      %p41 = scmp.ne.s32.totalorder %s36, %s38
      %p42 = scmp.eq.s32.totalorder %s28, 0
      %p43 = por %p41, %p42
      %p44 = scmp.ne.s32.totalorder %s36, %s38
      %p45 = scmp.eq.s32.totalorder %s33, 1
      %p46 = por %p44, %p45
      %p47 = scmp.ne.s32.totalorder %s38, %s39
      %p48 = scmp.eq.s32.totalorder %s33, 0
      %p49 = por %p47, %p48
      %p50 = scmp.ne.s32.totalorder %s38, %s39
      %p51 = scmp.eq.s32.totalorder %s34, 1
      %p52 = por %p50, %p51
      %p54 = scmp.ne.s32.totalorder %s39, %s53
      %p55 = scmp.eq.s32.totalorder %s34, 0
      %p56 = por %p54, %p55
      %s57 = ssub.s32 %s28, %s35
      %p58 = scmp.eq.s32.totalorder %s57, 0
      %s60 = sadd.s32 %s59, 1
      %s61 = scalar_select %p58, %s59, %s60
      %p64 = pneg %p58
      %p65 = scmp.eq.s32.totalorder %s28, 1
      %p66 = por %p64, %p65
      %p67 = scmp.ne.s32.totalorder %s59, %s62
      %p68 = scmp.eq.s32.totalorder %s28, 0
      %p69 = por %p67, %p68
      %p70 = scmp.ne.s32.totalorder %s59, %s62
      %p71 = scmp.eq.s32.totalorder %s33, 1
      %p72 = por %p70, %p71
      %p73 = scmp.ne.s32.totalorder %s62, %s63
      %p74 = scmp.eq.s32.totalorder %s33, 0
      %p75 = por %p73, %p74
      %p76 = scmp.ne.s32.totalorder %s62, %s63
      %p77 = scmp.eq.s32.totalorder %s34, 1
      %p78 = por %p76, %p77
      %p80 = scmp.ne.s32.totalorder %s63, %s79
      %p81 = scmp.eq.s32.totalorder %s34, 0
      %p82 = por %p80, %p81
      %s83 = ssub.s32 %s28, %s35
      %p84 = scmp.eq.s32.totalorder %s83, 0
      %s86 = sadd.s32 %s85, 1
      %s87 = scalar_select %p84, %s85, %s86
      %p90 = pneg %p84
      %p91 = scmp.eq.s32.totalorder %s28, 1
      %p92 = por %p90, %p91
      %p93 = scmp.ne.s32.totalorder %s85, %s88
      %p94 = scmp.eq.s32.totalorder %s28, 0
      %p95 = por %p93, %p94
      %p96 = scmp.ne.s32.totalorder %s85, %s88
      %p97 = scmp.eq.s32.totalorder %s33, 1
      %p98 = por %p96, %p97
      %p99 = scmp.ne.s32.totalorder %s88, %s89
      %p100 = scmp.eq.s32.totalorder %s33, 0
      %p101 = por %p99, %p100
      %p102 = scmp.ne.s32.totalorder %s88, %s89
      %p103 = scmp.eq.s32.totalorder %s34, 1
      %p104 = por %p102, %p103
      %p106 = scmp.ne.s32.totalorder %s89, %s105
      %p107 = scmp.eq.s32.totalorder %s34, 0
      %p108 = por %p106, %p107
      %s109 = ssub.s32 %s28, %s35
      %p110 = scmp.eq.s32.totalorder %s109, 0
      %s112 = sadd.s32 %s111, 1
      %s113 = scalar_select %p110, %s111, %s112
      %p116 = pneg %p110
      %p117 = scmp.eq.s32.totalorder %s28, 1
      %p118 = por %p116, %p117
      %p119 = scmp.ne.s32.totalorder %s111, %s114
      %p120 = scmp.eq.s32.totalorder %s28, 0
      %p121 = por %p119, %p120
      %p122 = scmp.ne.s32.totalorder %s111, %s114
      %p123 = scmp.eq.s32.totalorder %s33, 1
      %p124 = por %p122, %p123
      %p125 = scmp.ne.s32.totalorder %s114, %s115
      %p126 = scmp.eq.s32.totalorder %s33, 0
      %p127 = por %p125, %p126
      %p128 = scmp.ne.s32.totalorder %s114, %s115
      %p129 = scmp.eq.s32.totalorder %s34, 1
      %p130 = por %p128, %p129
      %p132 = scmp.ne.s32.totalorder %s115, %s131
      %p133 = scmp.eq.s32.totalorder %s34, 0
      %p134 = por %p132, %p133
      %s136 = sadd.s32 %s135, 1
      %p139 = scmp.eq.s32.totalorder %s28, 1
      %p140 = scmp.ne.s32.totalorder %s135, %s137
      %p141 = scmp.eq.s32.totalorder %s28, 0
      %p142 = por %p140, %p141
      %p143 = scmp.ne.s32.totalorder %s135, %s137
      %p144 = scmp.eq.s32.totalorder %s33, 1
      %p145 = por %p143, %p144
      %p146 = scmp.ne.s32.totalorder %s137, %s138
      %p147 = scmp.eq.s32.totalorder %s33, 0
      %p148 = por %p146, %p147
      %p149 = scmp.ne.s32.totalorder %s137, %s138
      %p150 = scmp.eq.s32.totalorder %s34, 1
      %p151 = por %p149, %p150
      %p153 = scmp.ne.s32.totalorder %s138, %s152
      %p154 = scmp.eq.s32.totalorder %s34, 0
      %p155 = por %p153, %p154
      %s157 = sadd.s32 %s156, 1
      %p160 = scmp.eq.s32.totalorder %s28, 1
      %p161 = scmp.ne.s32.totalorder %s156, %s158
      %p162 = scmp.eq.s32.totalorder %s28, 0
      %p163 = por %p161, %p162
      %p164 = scmp.ne.s32.totalorder %s156, %s158
      %p165 = scmp.eq.s32.totalorder %s33, 1
      %p166 = por %p164, %p165
      %p167 = scmp.ne.s32.totalorder %s158, %s159
      %p168 = scmp.eq.s32.totalorder %s33, 0
      %p169 = por %p167, %p168
      %p170 = scmp.ne.s32.totalorder %s158, %s159
      %p171 = scmp.eq.s32.totalorder %s34, 1
      %p172 = por %p170, %p171
      %p174 = scmp.ne.s32.totalorder %s159, %s173
      %p175 = scmp.eq.s32.totalorder %s34, 0
      %p176 = por %p174, %p175
      %s178 = sadd.s32 %s177, 1
      %p181 = scmp.eq.s32.totalorder %s28, 1
      %p182 = scmp.ne.s32.totalorder %s177, %s179
      %p183 = scmp.eq.s32.totalorder %s28, 0
      %p184 = por %p182, %p183
      %p185 = scmp.ne.s32.totalorder %s177, %s179
      %p186 = scmp.eq.s32.totalorder %s33, 1
      %p187 = por %p185, %p186
      %p188 = scmp.ne.s32.totalorder %s179, %s180
      %p189 = scmp.eq.s32.totalorder %s33, 0
      %p190 = por %p188, %p189
      %p191 = scmp.ne.s32.totalorder %s179, %s180
      %p192 = scmp.eq.s32.totalorder %s34, 1
      %p193 = por %p191, %p192
      %p195 = scmp.ne.s32.totalorder %s180, %s194
      %p196 = scmp.eq.s32.totalorder %s34, 0
      %p197 = por %p195, %p196
      %s198 = ssub.s32 %s28, %s35
      %p199 = scmp.eq.s32.totalorder %s198, 0
      %s201 = sadd.s32 %s200, 1
      %s202 = scalar_select %p199, %s200, %s201
      %p205 = pneg %p199
      %p206 = scmp.eq.s32.totalorder %s28, 1
      %p207 = por %p205, %p206
      %p208 = scmp.ne.s32.totalorder %s200, %s203
      %p209 = scmp.eq.s32.totalorder %s28, 0
      %p210 = por %p208, %p209
      %p211 = scmp.ne.s32.totalorder %s200, %s203
      %p212 = scmp.eq.s32.totalorder %s33, 1
      %p213 = por %p211, %p212
      %p214 = scmp.ne.s32.totalorder %s203, %s204
      %p215 = scmp.eq.s32.totalorder %s33, 0
      %p216 = por %p214, %p215
      %p217 = scmp.ne.s32.totalorder %s203, %s204
      %p218 = scmp.eq.s32.totalorder %s34, 1
      %p219 = por %p217, %p218
      %p221 = scmp.ne.s32.totalorder %s204, %s220
      %p222 = scmp.eq.s32.totalorder %s34, 0
      %p223 = por %p221, %p222
      %s224 = ssub.s32 %s28, %s35
      %p225 = scmp.eq.s32.totalorder %s224, 0
      %s227 = sadd.s32 %s226, 1
      %s228 = scalar_select %p225, %s226, %s227
      %p231 = pneg %p225
      %p232 = scmp.eq.s32.totalorder %s28, 1
      %p233 = por %p231, %p232
      %p234 = scmp.ne.s32.totalorder %s226, %s229
      %p235 = scmp.eq.s32.totalorder %s28, 0
      %p236 = por %p234, %p235
      %p237 = scmp.ne.s32.totalorder %s226, %s229
      %p238 = scmp.eq.s32.totalorder %s33, 1
      %p239 = por %p237, %p238
      %p240 = scmp.ne.s32.totalorder %s229, %s230
      %p241 = scmp.eq.s32.totalorder %s33, 0
      %p242 = por %p240, %p241
      %p243 = scmp.ne.s32.totalorder %s229, %s230
      %p244 = scmp.eq.s32.totalorder %s34, 1
      %p245 = por %p243, %p244
      %p247 = scmp.ne.s32.totalorder %s230, %s246
      %p248 = scmp.eq.s32.totalorder %s34, 0
      %p249 = por %p247, %p248
      %s250 = ssub.s32 %s28, %s35
      %p251 = scmp.eq.s32.totalorder %s250, 0
      %s253 = sadd.s32 %s252, 1
      %s254 = scalar_select %p251, %s252, %s253
      %p257 = pneg %p251
      %p258 = scmp.eq.s32.totalorder %s28, 1
      %p259 = por %p257, %p258
      %p260 = scmp.ne.s32.totalorder %s252, %s255
      %p261 = scmp.eq.s32.totalorder %s28, 0
      %p262 = por %p260, %p261
      %p263 = scmp.ne.s32.totalorder %s252, %s255
      %p264 = scmp.eq.s32.totalorder %s33, 1
      %p265 = por %p263, %p264
      %p266 = scmp.ne.s32.totalorder %s255, %s256
      %p267 = scmp.eq.s32.totalorder %s33, 0
      %p268 = por %p266, %p267
      %p269 = scmp.ne.s32.totalorder %s255, %s256
      %p270 = scmp.eq.s32.totalorder %s34, 1
      %p271 = por %p269, %p270
      %p273 = scmp.ne.s32.totalorder %s256, %s272
      %p274 = scmp.eq.s32.totalorder %s34, 0
      %p275 = por %p273, %p274
      %s276 = ssub.s32 %s28, %s35
      %p277 = scmp.eq.s32.totalorder %s276, 0
      %s279 = sadd.s32 %s278, 1
      %s280 = scalar_select %p277, %s278, %s279
      %p283 = pneg %p277
      %p284 = scmp.eq.s32.totalorder %s28, 1
      %p285 = por %p283, %p284
      %p286 = scmp.ne.s32.totalorder %s278, %s281
      %p287 = scmp.eq.s32.totalorder %s28, 0
      %p288 = por %p286, %p287
      %p289 = scmp.ne.s32.totalorder %s278, %s281
      %p290 = scmp.eq.s32.totalorder %s33, 1
      %p291 = por %p289, %p290
      %p292 = scmp.ne.s32.totalorder %s281, %s282
      %p293 = scmp.eq.s32.totalorder %s33, 0
      %p294 = por %p292, %p293
      %p295 = scmp.ne.s32.totalorder %s281, %s282
      %p296 = scmp.eq.s32.totalorder %s34, 1
      %p297 = por %p295, %p296
      %p299 = scmp.ne.s32.totalorder %s282, %s298
      %p300 = scmp.eq.s32.totalorder %s34, 0
      %p301 = por %p299, %p300
      %s302 = ssub.s32 %s28, %s35
      %p303 = scmp.eq.s32.totalorder %s302, 0
      %s305 = sadd.s32 %s304, 1
      %s306 = scalar_select %p303, %s304, %s305
      %p309 = pneg %p303
      %p310 = scmp.eq.s32.totalorder %s28, 1
      %p311 = por %p309, %p310
      %p312 = scmp.ne.s32.totalorder %s304, %s307
      %p313 = scmp.eq.s32.totalorder %s28, 0
      %p314 = por %p312, %p313
      %p315 = scmp.ne.s32.totalorder %s304, %s307
      %p316 = scmp.eq.s32.totalorder %s33, 1
      %p317 = por %p315, %p316
      %p318 = scmp.ne.s32.totalorder %s307, %s308
      %p319 = scmp.eq.s32.totalorder %s33, 0
      %p320 = por %p318, %p319
      %p321 = scmp.ne.s32.totalorder %s307, %s308
      %p322 = scmp.eq.s32.totalorder %s34, 1
      %p323 = por %p321, %p322
      %p325 = scmp.ne.s32.totalorder %s308, %s324
      %p326 = scmp.eq.s32.totalorder %s34, 0
      %p327 = por %p325, %p326
      %p328 = scmp.le.s32.totalorder 1, %s28
      %p329 = scmp.lt.s32.totalorder %s28, 3
      %p330 = pnand %p328, %p329
      %p331 = pneg %p330
      // Predicated region
      $region9: #{vae_forward.1} parent=5 // pred_check
        _
      $region10: #{vae_forward.1} parent=5 // pred_check_branch
        %333 = sbr.rel (%p330) target = $region12
      $region11: #{vae_forward.1} parent=5 // pred_region
        %s334 = ssub.s32 %s28, 1
        // Predicated region
        $region13: #{vae_forward.1} parent=11 // pred_check
          %p335 = pneg %p49
        $region14: #{vae_forward.1} parent=11 // pred_check_branch
          %337 = sbr.rel (%p335) target = $region16
        $region15: #{vae_forward.1} parent=11 // pred_region
          _
        $region16: #{vae_forward.1} parent=11 // pred_fallthru
          _
        // Predicated region
        $region17: #{vae_forward.1} parent=11 // pred_check
          %p338 = pneg %p148
        $region18: #{vae_forward.1} parent=11 // pred_check_branch
          %340 = sbr.rel (%p338) target = $region20
        $region19: #{vae_forward.1} parent=11 // pred_region
          _
        $region20: #{vae_forward.1} parent=11 // pred_fallthru
          _
        // Predicated region
        $region21: #{vae_forward.1} parent=11 // pred_check
          %p341 = pneg %p169
        $region22: #{vae_forward.1} parent=11 // pred_check_branch
          %343 = sbr.rel (%p341) target = $region24
        $region23: #{vae_forward.1} parent=11 // pred_region
          _
        $region24: #{vae_forward.1} parent=11 // pred_fallthru
          _
        // Predicated region
        $region25: #{vae_forward.1} parent=11 // pred_check
          %p344 = pneg %p190
        $region26: #{vae_forward.1} parent=11 // pred_check_branch
          %346 = sbr.rel (%p344) target = $region28
        $region27: #{vae_forward.1} parent=11 // pred_region
          _
        $region28: #{vae_forward.1} parent=11 // pred_fallthru
          _
      $region12: #{vae_forward.1} parent=5 // pred_fallthru
        _
      %p347 = scmp.lt.s32.totalorder %s28, 2
      // Predicated region
      $region29: #{vae_forward.1} parent=5 // pred_check
        %p348 = pneg %p347
      $region30: #{vae_forward.1} parent=5 // pred_check_branch
        %350 = sbr.rel (%p348) target = $region32
      $region31: #{vae_forward.1} parent=5 // pred_region
        // Predicated region
        $region33: #{vae_forward.1} parent=31 // pred_check
          %p351 = pneg %p69
        $region34: #{vae_forward.1} parent=31 // pred_check_branch
          %353 = sbr.rel (%p351) target = $region36
        $region35: #{vae_forward.1} parent=31 // pred_region
          %p354 = scmp.lt.s32.totalorder %s28, 1
          %s355 = scalar_select %p354, %s28, 1
          %s356 = smul.addr %s355, 8
          %s357 = scalar_lea.vmem %s1, %s356
        $region36: #{vae_forward.1} parent=31 // pred_fallthru
          _
        // Predicated region
        $region37: #{vae_forward.1} parent=31 // pred_check
          %p358 = pneg %p95
        $region38: #{vae_forward.1} parent=31 // pred_check_branch
          %360 = sbr.rel (%p358) target = $region40
        $region39: #{vae_forward.1} parent=31 // pred_region
          %p361 = scmp.lt.s32.totalorder %s28, 1
          %s362 = scalar_select %p361, %s28, 1
          %s363 = smul.addr %s362, 8
          %s364 = scalar_lea.vmem %s2, %s363
        $region40: #{vae_forward.1} parent=31 // pred_fallthru
          _
        // Predicated region
        $region41: #{vae_forward.1} parent=31 // pred_check
          %p365 = pneg %p121
        $region42: #{vae_forward.1} parent=31 // pred_check_branch
          %367 = sbr.rel (%p365) target = $region44
        $region43: #{vae_forward.1} parent=31 // pred_region
          %p368 = scmp.lt.s32.totalorder %s28, 1
          %s369 = scalar_select %p368, %s28, 1
          %s370 = scalar_lea.vmem %s3, %s369
        $region44: #{vae_forward.1} parent=31 // pred_fallthru
          _
      $region32: #{vae_forward.1} parent=5 // pred_fallthru
        _
      %p371 = scmp.le.s32.totalorder 1, %s28
      %p372 = scmp.lt.s32.totalorder %s28, 3
      %p373 = pnand %p371, %p372
      %p374 = pneg %p373
      // Predicated region
      $region45: #{vae_forward.1} parent=5 // pred_check
        _
      $region46: #{vae_forward.1} parent=5 // pred_check_branch
        %376 = sbr.rel (%p373) target = $region48
      $region47: #{vae_forward.1} parent=5 // pred_region
        %s377 = ssub.s32 %s28, 1
        %p378 = pneg %p49
        %p379 = pneg %p46
        %p380 = scmp.lt.s32.totalorder %s33, 1
        %s381 = scalar_select %p380, %s33, 1
        %s382 = smul.addr %s381, 8
        %s383 = scalar_lea.vmem %s1, %s382
        %p384 = pneg %p75
        %p385 = pneg %p72
        %p386 = scmp.lt.s32.totalorder %s33, 1
        %s387 = scalar_select %p386, %s33, 1
        %s388 = smul.addr %s387, 8
        %s389 = scalar_lea.vmem %s2, %s388
        %p390 = pneg %p101
        %p391 = pneg %p98
        %p392 = scmp.lt.s32.totalorder %s33, 1
        %s393 = scalar_select %p392, %s33, 1
        %s394 = scalar_lea.vmem %s3, %s393
        %p395 = pneg %p127
        %p396 = pneg %p124
        %p397 = pneg %p148
        %p398 = pneg %p145
        %p399 = pneg %p169
        %p400 = pneg %p166
        %p401 = pneg %p190
        %p402 = pneg %p187
        %p403 = pneg %p216
        %p404 = pneg %p213
        %s405 = sand.u32 %s203, 1
        %s406 = scalar_lea.sflag [#allocation4], %s405
        %s407 = sand.u32 %s203, 1
        %s408 = smul.addr %s407, 4
        %s409 = scalar_lea.vmem [#allocation3], %s408
        %p410 = pneg %p242
        %p411 = pneg %p239
        %s412 = sand.u32 %s33, 1
        %s413 = scalar_lea.sflag [#allocation6], %s412
        %s414 = sand.u32 %s229, 1
        %s415 = scalar_lea.vmem [#allocation5], %s414
        %p416 = pneg %p268
        %p417 = pneg %p265
        %s418 = sand.u32 %s33, 1
        %s419 = scalar_lea.sflag [#allocation6], %s418
        %s420 = sand.u32 %s255, 1
        %s421 = scalar_lea.vmem [#allocation7], %s420
        %p422 = pneg %p294
        %p423 = pneg %p291
        %s424 = sand.u32 %s281, 1
        %s425 = scalar_lea.sflag [#allocation9], %s424
        %s426 = sand.u32 %s281, 1
        %s427 = scalar_lea.vmem [#allocation8], %s426
        %p428 = pneg %p320
        %p429 = pneg %p317
        %p430 = scmp.lt.s32.totalorder %s33, 1
        %s431 = scalar_select %p430, %s33, 1
        %s432 = smul.addr %s431, 8
        %s433 = scalar_lea.vmem %s11, %s432
        %p434 = scmp.lt.s32.totalorder %s33, 1
        %s435 = scalar_select %p434, %s33, 1
        %s436 = smul.addr %s435, 8
        %s437 = scalar_lea.vmem %s1, %s436
        %p438 = scmp.lt.s32.totalorder %s33, 1
        %s439 = scalar_select %p438, %s33, 1
        %s440 = smul.addr %s439, 8
        %s441 = scalar_lea.vmem %s2, %s440
        %p442 = scmp.lt.s32.totalorder %s33, 1
        %s443 = scalar_select %p442, %s33, 1
        %s444 = scalar_lea.vmem %s3, %s443
        %p445 = scmp.lt.s32.totalorder %s33, 1
        %s446 = scalar_select %p445, %s33, 1
        %s447 = smul.addr %s446, 8
        %s448 = scalar_lea.vmem %s11, %s447
        %s449 = sld [smem:[#allocation2]]
        %v450 = vld [vmem:[%s441] sm:$0xff]
        %v451 = vstv %s449
        %v452 = vmul.f32 %v450, %v451
        %vm453 = vcmask 7168
        %454 = vst.msk [vmem:[%s448] sm:$0xff] %vm453, %v452
        %v455 = vld [vmem:[%s4] sm:$0xf]
        %v456 = vld [vmem:[%s4 + $0x4] sm:$0x1]
        %v457 = vld [vmem:[%s4 + $0x5] sm:$0x1]
        %v458 = vld [vmem:[%s437] sm:$0xff]
        %460 = vset.pattern.permute.xlu0 0
        %461 = vperm.xlu0 %460, %v452
        %v462 = vpop.permute.xlu0 %461
        %v464 = vlaneseq
        %v465 = vshrl.u32 %v464, 7
        %v466 = vsub.s32 0, %v465
        %v467 = vrot.slane %v456, %v466
        %v468 = vmul.f32 %v462, %v467
        %vm469 = vcmask 31744
        %v471 = vsel %vm469, %v458, 0
        %vm473 = vcmask 1043456
        %v475 = vsel %vm473, %v455, 0
        %477 = vmatprep.subr.mxu0 0.0
        %478 = vmatpush1.msra.mxu0 %v475
        %479 = vmatprep.subr.mxu0 0.0
        %480 = vmatpush1.msra.mxu0 0.0
        %481 = vmatprep.subr.mxu0 0.0
        %482 = vmatpush1.msra.mxu0 0.0
        %483 = vmatprep.subr.mxu0 0.0
        %484 = vmatpush1.msra.mxu0 0.0
        %485 = vmatprep.subr.mxu0 0.0
        %486 = vmatpush1.msra.mxu0 0.0
        %487 = vmatprep.subr.mxu0 0.0
        %488 = vmatpush1.msra.mxu0 0.0
        %489 = vmatprep.subr.mxu0 0.0
        %490 = vmatpush1.msra.mxu0 0.0
        %491 = vmatprep.subr.mxu0 0.0
        %492 = vmatpush1.msra.mxu0 0.0
        %493 = vmatprep.subr.mxu0 0.0
        %494 = vmatpush1.msra.mxu0 0.0
        %495 = vmatprep.subr.mxu0 0.0
        %496 = vmatpush1.msra.mxu0 0.0
        %497 = vmatprep.subr.mxu0 0.0
        %498 = vmatpush1.msra.mxu0 0.0
        %499 = vmatprep.subr.mxu0 0.0
        %500 = vmatpush1.msra.mxu0 0.0
        %501 = vmatprep.subr.mxu0 0.0
        %502 = vmatpush1.msra.mxu0 0.0
        %503 = vmatprep.subr.mxu0 0.0
        %504 = vmatpush1.msra.mxu0 0.0
        %505 = vmatprep.subr.mxu0 0.0
        %506 = vmatpush1.msra.mxu0 0.0
        %507 = vmatprep.subr.mxu0 0.0
        %508 = vmatpush1.msra.mxu0 0.0
        %509 = vmatprep.subr.mxu0 0.0
        %510 = vmatpush1.msra.mxu0 0.0
        %511 = vmatprep.subr.mxu0 0.0
        %512 = vmatpush1.msra.mxu0 0.0
        %513 = vmatprep.subr.mxu0 0.0
        %514 = vmatpush1.msra.mxu0 0.0
        %515 = vmatprep.subr.mxu0 0.0
        %516 = vmatpush1.msra.mxu0 0.0
        %517 = vmatprep.subr.mxu0 0.0
        %518 = vmatpush1.msra.mxu0 0.0
        %519 = vmatprep.subr.mxu0 0.0
        %520 = vmatpush1.msra.mxu0 0.0
        %521 = vmatprep.subr.mxu0 0.0
        %522 = vmatpush1.msra.mxu0 0.0
        %523 = vmatprep.subr.mxu0 0.0
        %524 = vmatpush1.msra.mxu0 0.0
        %525 = vmatprep.subr.mxu0 0.0
        %526 = vmatpush1.msra.mxu0 0.0
        %527 = vmatprep.subr.mxu0 0.0
        %528 = vmatpush1.msra.mxu0 0.0
        %529 = vmatprep.subr.mxu0 0.0
        %530 = vmatpush1.msra.mxu0 0.0
        %531 = vmatprep.subr.mxu0 0.0
        %532 = vmatpush1.msra.mxu0 0.0
        %533 = vmatprep.subr.mxu0 0.0
        %534 = vmatpush1.msra.mxu0 0.0
        %535 = vmatprep.subr.mxu0 0.0
        %536 = vmatpush1.msra.mxu0 0.0
        %537 = vmatprep.subr.mxu0 0.0
        %538 = vmatpush1.msra.mxu0 0.0
        %539 = vmatprep.subr.mxu0 0.0
        %540 = vmatpush1.msra.mxu0 0.0
        %541 = vmatprep.mubr.f32.mxu0 0.0
        %542 = vmatmul.mubr.f32.gmra.mrb[0].mxu0 %v471
        %v543 = vpop.f32.mrb[0].mxu0
        %v544 = vadd.f32 %v468, %v543
        %v545 = vpop.f32.mrb[0].mxu0
        %546 = vdwg.mxu0
        %v547 = vlaneseq
        %v548 = vshrl.u32 %v547, 7
        %v549 = vsub.s32 0, %v548
        %v550 = vrot.slane %v457, %v549
        %v551 = vadd.f32 %v544, %v550
        %v552 = vtanh.pop %v551
        %vm553 = vcmask 261120
        %v554 = vsel %vm553, %v552, 0.0
        %v555 = vrot.slane %v554, 4
        %v556 = vadd.f32 %v554, %v555
        %v557 = vrot.slane %v556, 2
        %v558 = vadd.f32 %v556, %v557
        %v559 = vrot.slane %v558, 1
        %v560 = vadd.f32 %v558, %v559
        %v561 = vrcp.pop 8.0
        %v562 = vmul.f32 %v560, %v561
        %v563 = vld [vmem:[%s5] sm:$0xff]
        %v564 = vld [vmem:[%s5 + $0x8] sm:$0xff]
        %v565 = vld [vmem:[%s5 + $0x10] sm:$0xff]
        %v566 = vld [vmem:[%s5 + $0x18] sm:$0xff]
        %v567 = vld [vmem:[%s5 + $0x20] sm:$0x1]
        %v568 = vld [vmem:[%s5 + $0x21] sm:$0xff]
        %v569 = vld [vmem:[%s5 + $0x29] sm:$0xff]
        %v570 = vld [vmem:[%s5 + $0x31] sm:$0xff]
        %v571 = vld [vmem:[%s5 + $0x39] sm:$0xff]
        %v572 = vld [vmem:[%s5 + $0x41] sm:$0x1]
        %v574 = vsel %vm553, %v562, 0
        %576 = vmatprep.subr.mxu0 0.0
        %577 = vmatpush1.msra.mxu0 %v563
        %578 = vmatprep.subr.mxu0 0.0
        %579 = vmatpush1.msra.mxu0 %v564
        %580 = vmatprep.subr.mxu0 0.0
        %581 = vmatpush1.msra.mxu0 %v565
        %582 = vmatprep.subr.mxu0 0.0
        %583 = vmatpush1.msra.mxu0 %v566
        %584 = vmatprep.subr.mxu0 0.0
        %585 = vmatpush1.msra.mxu0 0.0
        %586 = vmatprep.subr.mxu0 0.0
        %587 = vmatpush1.msra.mxu0 0.0
        %588 = vmatprep.subr.mxu0 0.0
        %589 = vmatpush1.msra.mxu0 0.0
        %590 = vmatprep.subr.mxu0 0.0
        %591 = vmatpush1.msra.mxu0 0.0
        %592 = vmatprep.subr.mxu0 0.0
        %593 = vmatpush1.msra.mxu0 0.0
        %594 = vmatprep.subr.mxu0 0.0
        %595 = vmatpush1.msra.mxu0 0.0
        %596 = vmatprep.subr.mxu0 0.0
        %597 = vmatpush1.msra.mxu0 0.0
        %598 = vmatprep.subr.mxu0 0.0
        %599 = vmatpush1.msra.mxu0 0.0
        %600 = vmatprep.subr.mxu0 0.0
        %601 = vmatpush1.msra.mxu0 0.0
        %602 = vmatprep.subr.mxu0 0.0
        %603 = vmatpush1.msra.mxu0 0.0
        %604 = vmatprep.subr.mxu0 0.0
        %605 = vmatpush1.msra.mxu0 0.0
        %606 = vmatprep.subr.mxu0 0.0
        %607 = vmatpush1.msra.mxu0 0.0
        %608 = vmatprep.subr.mxu0 0.0
        %609 = vmatpush1.msra.mxu0 0.0
        %610 = vmatprep.subr.mxu0 0.0
        %611 = vmatpush1.msra.mxu0 0.0
        %612 = vmatprep.subr.mxu0 0.0
        %613 = vmatpush1.msra.mxu0 0.0
        %614 = vmatprep.subr.mxu0 0.0
        %615 = vmatpush1.msra.mxu0 0.0
        %616 = vmatprep.subr.mxu0 0.0
        %617 = vmatpush1.msra.mxu0 0.0
        %618 = vmatprep.subr.mxu0 0.0
        %619 = vmatpush1.msra.mxu0 0.0
        %620 = vmatprep.subr.mxu0 0.0
        %621 = vmatpush1.msra.mxu0 0.0
        %622 = vmatprep.subr.mxu0 0.0
        %623 = vmatpush1.msra.mxu0 0.0
        %624 = vmatprep.subr.mxu0 0.0
        %625 = vmatpush1.msra.mxu0 0.0
        %626 = vmatprep.subr.mxu0 0.0
        %627 = vmatpush1.msra.mxu0 0.0
        %628 = vmatprep.subr.mxu0 0.0
        %629 = vmatpush1.msra.mxu0 0.0
        %630 = vmatprep.subr.mxu0 0.0
        %631 = vmatpush1.msra.mxu0 0.0
        %632 = vmatprep.subr.mxu0 0.0
        %633 = vmatpush1.msra.mxu0 0.0
        %634 = vmatprep.subr.mxu0 0.0
        %635 = vmatpush1.msra.mxu0 0.0
        %636 = vmatprep.subr.mxu0 0.0
        %637 = vmatpush1.msra.mxu0 0.0
        %638 = vmatprep.subr.mxu0 0.0
        %639 = vmatpush1.msra.mxu0 0.0
        %640 = vmatprep.mubr.f32.mxu0 0.0
        %641 = vmatmul.mubr.f32.gmra.mrb[0].mxu0 %v574
        %v642 = vpop.f32.mrb[0].mxu0
        %v643 = vadd.f32 %v567, %v642
        %v644 = vpop.f32.mrb[0].mxu0
        %645 = vdwg.mxu0
        %646 = vmatprep.subr.mxu0 0.0
        %647 = vmatpush1.msra.mxu0 %v568
        %648 = vmatprep.subr.mxu0 0.0
        %649 = vmatpush1.msra.mxu0 %v569
        %650 = vmatprep.subr.mxu0 0.0
        %651 = vmatpush1.msra.mxu0 %v570
        %652 = vmatprep.subr.mxu0 0.0
        %653 = vmatpush1.msra.mxu0 %v571
        %654 = vmatprep.subr.mxu0 0.0
        %655 = vmatpush1.msra.mxu0 0.0
        %656 = vmatprep.subr.mxu0 0.0
        %657 = vmatpush1.msra.mxu0 0.0
        %658 = vmatprep.subr.mxu0 0.0
        %659 = vmatpush1.msra.mxu0 0.0
        %660 = vmatprep.subr.mxu0 0.0
        %661 = vmatpush1.msra.mxu0 0.0
        %662 = vmatprep.subr.mxu0 0.0
        %663 = vmatpush1.msra.mxu0 0.0
        %664 = vmatprep.subr.mxu0 0.0
        %665 = vmatpush1.msra.mxu0 0.0
        %666 = vmatprep.subr.mxu0 0.0
        %667 = vmatpush1.msra.mxu0 0.0
        %668 = vmatprep.subr.mxu0 0.0
        %669 = vmatpush1.msra.mxu0 0.0
        %670 = vmatprep.subr.mxu0 0.0
        %671 = vmatpush1.msra.mxu0 0.0
        %672 = vmatprep.subr.mxu0 0.0
        %673 = vmatpush1.msra.mxu0 0.0
        %674 = vmatprep.subr.mxu0 0.0
        %675 = vmatpush1.msra.mxu0 0.0
        %676 = vmatprep.subr.mxu0 0.0
        %677 = vmatpush1.msra.mxu0 0.0
        %678 = vmatprep.subr.mxu0 0.0
        %679 = vmatpush1.msra.mxu0 0.0
        %680 = vmatprep.subr.mxu0 0.0
        %681 = vmatpush1.msra.mxu0 0.0
        %682 = vmatprep.subr.mxu0 0.0
        %683 = vmatpush1.msra.mxu0 0.0
        %684 = vmatprep.subr.mxu0 0.0
        %685 = vmatpush1.msra.mxu0 0.0
        %686 = vmatprep.subr.mxu0 0.0
        %687 = vmatpush1.msra.mxu0 0.0
        %688 = vmatprep.subr.mxu0 0.0
        %689 = vmatpush1.msra.mxu0 0.0
        %690 = vmatprep.subr.mxu0 0.0
        %691 = vmatpush1.msra.mxu0 0.0
        %692 = vmatprep.subr.mxu0 0.0
        %693 = vmatpush1.msra.mxu0 0.0
        %694 = vmatprep.subr.mxu0 0.0
        %695 = vmatpush1.msra.mxu0 0.0
        %696 = vmatprep.subr.mxu0 0.0
        %697 = vmatpush1.msra.mxu0 0.0
        %698 = vmatprep.subr.mxu0 0.0
        %699 = vmatpush1.msra.mxu0 0.0
        %700 = vmatprep.subr.mxu0 0.0
        %701 = vmatpush1.msra.mxu0 0.0
        %702 = vmatprep.subr.mxu0 0.0
        %703 = vmatpush1.msra.mxu0 0.0
        %704 = vmatprep.subr.mxu0 0.0
        %705 = vmatpush1.msra.mxu0 0.0
        %706 = vmatprep.subr.mxu0 0.0
        %707 = vmatpush1.msra.mxu0 0.0
        %708 = vmatprep.subr.mxu0 0.0
        %709 = vmatpush1.msra.mxu0 0.0
        %710 = vmatprep.mubr.f32.mxu0 0.0
        %711 = vmatmul.mubr.f32.gmra.mrb[0].mxu0 %v574
        %v712 = vpop.f32.mrb[0].mxu0
        %v713 = vadd.f32 %v572, %v712
        %v714 = vpop.f32.mrb[0].mxu0
        %715 = vdwg.mxu0
        %vm716 = vcmask 57344
        %717 = vst.msk [vmem:[%s415] sm:$0x1] %vm716, %v643
        %718 = vst.msk [vmem:[%s421] sm:$0x1] %vm716, %v713
        %v719 = vld [vmem:[%s444] sm:$0x1]
        %v720 = vmul.f32 %v713, 0.5
        %v721 = vmul.f32 %v720, 1.442695
        %v722 = vpow.pop %v721
        %v723 = vmul.f32 %v719, %v722
        %v724 = vadd.f32 %v643, %v723
        %725 = vst.msk [vmem:[%s427] sm:$0x1] %vm716, %v724
        %v726 = vld [vmem:[%s4 + $0x6] sm:$0xff]
        %v727 = vld [vmem:[%s4 + $0xe] sm:$0x1]
        %v728 = vld [vmem:[%s4 + $0xf] sm:$0x1]
        %v729 = vld [vmem:[%s4 + $0x10] sm:$0xf]
        %vm730 = vcmask 64512
        %v732 = vsel %vm730, %v724, 0
        %734 = vmatprep.subr.mxu0 0.0
        %735 = vmatpush1.msra.mxu0 %v726
        %736 = vmatprep.subr.mxu0 0.0
        %737 = vmatpush1.msra.mxu0 0.0
        %738 = vmatprep.subr.mxu0 0.0
        %739 = vmatpush1.msra.mxu0 0.0
        %740 = vmatprep.subr.mxu0 0.0
        %741 = vmatpush1.msra.mxu0 0.0
        %742 = vmatprep.subr.mxu0 0.0
        %743 = vmatpush1.msra.mxu0 0.0
        %744 = vmatprep.subr.mxu0 0.0
        %745 = vmatpush1.msra.mxu0 0.0
        %746 = vmatprep.subr.mxu0 0.0
        %747 = vmatpush1.msra.mxu0 0.0
        %748 = vmatprep.subr.mxu0 0.0
        %749 = vmatpush1.msra.mxu0 0.0
        %750 = vmatprep.subr.mxu0 0.0
        %751 = vmatpush1.msra.mxu0 0.0
        %752 = vmatprep.subr.mxu0 0.0
        %753 = vmatpush1.msra.mxu0 0.0
        %754 = vmatprep.subr.mxu0 0.0
        %755 = vmatpush1.msra.mxu0 0.0
        %756 = vmatprep.subr.mxu0 0.0
        %757 = vmatpush1.msra.mxu0 0.0
        %758 = vmatprep.subr.mxu0 0.0
        %759 = vmatpush1.msra.mxu0 0.0
        %760 = vmatprep.subr.mxu0 0.0
        %761 = vmatpush1.msra.mxu0 0.0
        %762 = vmatprep.subr.mxu0 0.0
        %763 = vmatpush1.msra.mxu0 0.0
        %764 = vmatprep.subr.mxu0 0.0
        %765 = vmatpush1.msra.mxu0 0.0
        %766 = vmatprep.subr.mxu0 0.0
        %767 = vmatpush1.msra.mxu0 0.0
        %768 = vmatprep.subr.mxu0 0.0
        %769 = vmatpush1.msra.mxu0 0.0
        %770 = vmatprep.subr.mxu0 0.0
        %771 = vmatpush1.msra.mxu0 0.0
        %772 = vmatprep.subr.mxu0 0.0
        %773 = vmatpush1.msra.mxu0 0.0
        %774 = vmatprep.subr.mxu0 0.0
        %775 = vmatpush1.msra.mxu0 0.0
        %776 = vmatprep.subr.mxu0 0.0
        %777 = vmatpush1.msra.mxu0 0.0
        %778 = vmatprep.subr.mxu0 0.0
        %779 = vmatpush1.msra.mxu0 0.0
        %780 = vmatprep.subr.mxu0 0.0
        %781 = vmatpush1.msra.mxu0 0.0
        %782 = vmatprep.subr.mxu0 0.0
        %783 = vmatpush1.msra.mxu0 0.0
        %784 = vmatprep.subr.mxu0 0.0
        %785 = vmatpush1.msra.mxu0 0.0
        %786 = vmatprep.subr.mxu0 0.0
        %787 = vmatpush1.msra.mxu0 0.0
        %788 = vmatprep.subr.mxu0 0.0
        %789 = vmatpush1.msra.mxu0 0.0
        %790 = vmatprep.subr.mxu0 0.0
        %791 = vmatpush1.msra.mxu0 0.0
        %792 = vmatprep.subr.mxu0 0.0
        %793 = vmatpush1.msra.mxu0 0.0
        %794 = vmatprep.subr.mxu0 0.0
        %795 = vmatpush1.msra.mxu0 0.0
        %796 = vmatprep.subr.mxu0 0.0
        %797 = vmatpush1.msra.mxu0 0.0
        %798 = vmatprep.mubr.f32.mxu0 0.0
        %799 = vmatmul.mubr.f32.gmra.mrb[0].mxu0 %v732
        %v800 = vpop.f32.mrb[0].mxu0
        %v801 = vadd.f32 0.0, %v800
        %v802 = vpop.f32.mrb[0].mxu0
        %803 = vdwg.mxu0
        %v804 = vlaneseq
        %v805 = vshrl.u32 %v804, 7
        %v806 = vsub.s32 0, %v805
        %v807 = vrot.slane %v727, %v806
        %v808 = vmul.f32 %v462, %v807
        %v809 = vlaneseq
        %v810 = vshrl.u32 %v809, 7
        %v811 = vsub.s32 0, %v810
        %v812 = vrot.slane %v801, %v811
        %v813 = vadd.f32 %v812, %v808
        %v814 = vlaneseq
        %v815 = vshrl.u32 %v814, 7
        %v816 = vsub.s32 0, %v815
        %v817 = vrot.slane %v728, %v816
        %v818 = vadd.f32 %v813, %v817
        %v819 = vtanh.pop %v818
        %v820 = vld [vmem:[%s6] sm:$0xf]
        %822 = vset.pattern.permute.xlu0 0
        %823 = vperm.xlu0 %822, %v820
        %v824 = vpop.permute.xlu0 %823
        %v827 = vsel %vm553, %v729, 0
        %v830 = vsel %vm553, %v819, 0
        %832 = vmatprep.subr.mxu0 0.0
        %833 = vmatpush1.xpose.msra.mxu0 %v830
        %834 = vmatprep.subr.mxu0 0.0
        %835 = vmatpush1.xpose.msra.mxu0 0.0
        %836 = vmatprep.subr.mxu0 0.0
        %837 = vmatpush1.xpose.msra.mxu0 0.0
        %838 = vmatprep.subr.mxu0 0.0
        %839 = vmatpush1.xpose.msra.mxu0 0.0
        %840 = vmatprep.subr.mxu0 0.0
        %841 = vmatpush1.xpose.msra.mxu0 0.0
        %842 = vmatprep.subr.mxu0 0.0
        %843 = vmatpush1.xpose.msra.mxu0 0.0
        %844 = vmatprep.subr.mxu0 0.0
        %845 = vmatpush1.xpose.msra.mxu0 0.0
        %846 = vmatprep.subr.mxu0 0.0
        %847 = vmatpush1.xpose.msra.mxu0 0.0
        %848 = vmatprep.subr.mxu0 0.0
        %849 = vmatpush1.xpose.msra.mxu0 0.0
        %850 = vmatprep.subr.mxu0 0.0
        %851 = vmatpush1.xpose.msra.mxu0 0.0
        %852 = vmatprep.subr.mxu0 0.0
        %853 = vmatpush1.xpose.msra.mxu0 0.0
        %854 = vmatprep.subr.mxu0 0.0
        %855 = vmatpush1.xpose.msra.mxu0 0.0
        %856 = vmatprep.subr.mxu0 0.0
        %857 = vmatpush1.xpose.msra.mxu0 0.0
        %858 = vmatprep.subr.mxu0 0.0
        %859 = vmatpush1.xpose.msra.mxu0 0.0
        %860 = vmatprep.subr.mxu0 0.0
        %861 = vmatpush1.xpose.msra.mxu0 0.0
        %862 = vmatprep.subr.mxu0 0.0
        %863 = vmatpush1.xpose.msra.mxu0 0.0
        %864 = vmatprep.subr.mxu0 0.0
        %865 = vmatpush1.xpose.msra.mxu0 0.0
        %866 = vmatprep.subr.mxu0 0.0
        %867 = vmatpush1.xpose.msra.mxu0 0.0
        %868 = vmatprep.subr.mxu0 0.0
        %869 = vmatpush1.xpose.msra.mxu0 0.0
        %870 = vmatprep.subr.mxu0 0.0
        %871 = vmatpush1.xpose.msra.mxu0 0.0
        %872 = vmatprep.subr.mxu0 0.0
        %873 = vmatpush1.xpose.msra.mxu0 0.0
        %874 = vmatprep.subr.mxu0 0.0
        %875 = vmatpush1.xpose.msra.mxu0 0.0
        %876 = vmatprep.subr.mxu0 0.0
        %877 = vmatpush1.xpose.msra.mxu0 0.0
        %878 = vmatprep.subr.mxu0 0.0
        %879 = vmatpush1.xpose.msra.mxu0 0.0
        %880 = vmatprep.subr.mxu0 0.0
        %881 = vmatpush1.xpose.msra.mxu0 0.0
        %882 = vmatprep.subr.mxu0 0.0
        %883 = vmatpush1.xpose.msra.mxu0 0.0
        %884 = vmatprep.subr.mxu0 0.0
        %885 = vmatpush1.xpose.msra.mxu0 0.0
        %886 = vmatprep.subr.mxu0 0.0
        %887 = vmatpush1.xpose.msra.mxu0 0.0
        %888 = vmatprep.subr.mxu0 0.0
        %889 = vmatpush1.xpose.msra.mxu0 0.0
        %890 = vmatprep.subr.mxu0 0.0
        %891 = vmatpush1.xpose.msra.mxu0 0.0
        %892 = vmatprep.subr.mxu0 0.0
        %893 = vmatpush1.xpose.msra.mxu0 0.0
        %894 = vmatprep.subr.mxu0 0.0
        %895 = vmatpush1.xpose.msra.mxu0 0.0
        %896 = vmatprep.mubr.f32.mxu0 0.0
        %897 = vmatmul.mubr.f32.gmra.mrb[0].mxu0 %v827
        %v898 = vpop.f32.mrb[0].mxu0
        %v899 = vadd.f32 %v824, %v898
        %v900 = vpop.f32.mrb[0].mxu0
        %901 = vdwg.mxu0
        %vm902 = vcmask 60416
        %903 = vst.msk [vmem:[%s409] sm:$0xf] %vm902, %v899
        %s904 = sand.u32 %s203, 1
        %s905 = scalar_lea.sflag [#allocation4], %s904
        %s906 = sand.u32 %s203, 1
        %s907 = smul.addr %s906, 4
        %s908 = scalar_lea.vmem [#allocation3], %s907
        %s909 = sand.u32 %s33, 1
        %s910 = scalar_lea.sflag [#allocation6], %s909
        %s911 = sand.u32 %s229, 1
        %s912 = scalar_lea.vmem [#allocation5], %s911
        %s913 = sand.u32 %s33, 1
        %s914 = scalar_lea.sflag [#allocation6], %s913
        %s915 = sand.u32 %s255, 1
        %s916 = scalar_lea.vmem [#allocation7], %s915
        %s917 = sand.u32 %s281, 1
        %s918 = scalar_lea.sflag [#allocation9], %s917
        %s919 = sand.u32 %s281, 1
        %s920 = scalar_lea.vmem [#allocation8], %s919
        %p921 = scmp.lt.s32.totalorder %s33, 1
        %s922 = scalar_select %p921, %s33, 1
        %s923 = smul.addr %s922, 8
        %s924 = scalar_lea.vmem %s11, %s923
        // Predicated region
        $region49: #{vae_forward.1} parent=47 // pred_check
          %p925 = pneg %p213
        $region50: #{vae_forward.1} parent=47 // pred_check_branch
          %927 = sbr.rel (%p925) target = $region52
        $region51: #{vae_forward.1} parent=47 // pred_region
          %s929 = ssub.s32 64, 64
          %930 = vsyncadd %s905, %s929
          %s931 = smul.addr %s33, 64
          %s932 = scalar_lea.hbm %s7, %s931
          %s934 = sshll.u32 %s908, 4
          %s935 = int_to_ptr.vmem [resolvable:$true] %s934
          %937 = dma.vmem_to_hbm [thread:$0]  %s935, 64, %s932, %s905
        $region52: #{vae_forward.1} parent=47 // pred_fallthru
          _
        // Predicated region
        $region53: #{vae_forward.1} parent=47 // pred_check
          %p938 = pneg %p239
        $region54: #{vae_forward.1} parent=47 // pred_check_branch
          %940 = sbr.rel (%p938) target = $region56
        $region55: #{vae_forward.1} parent=47 // pred_region
          %s942 = ssub.s32 16, 16
          %943 = vsyncadd %s910, %s942
          %s944 = smul.addr %s33, 16
          %s945 = scalar_lea.hbm %s8, %s944
          %s947 = sshll.u32 %s912, 4
          %s948 = int_to_ptr.vmem [resolvable:$true] %s947
          %950 = dma.vmem_to_hbm [thread:$0]  %s948, 16, %s945, %s910
        $region56: #{vae_forward.1} parent=47 // pred_fallthru
          _
        // Predicated region
        $region57: #{vae_forward.1} parent=47 // pred_check
          %p951 = pneg %p265
        $region58: #{vae_forward.1} parent=47 // pred_check_branch
          %953 = sbr.rel (%p951) target = $region60
        $region59: #{vae_forward.1} parent=47 // pred_region
          %s955 = ssub.s32 16, 16
          %956 = vsyncadd %s914, %s955
          %s957 = smul.addr %s33, 16
          %s958 = scalar_lea.hbm %s9, %s957
          %s960 = sshll.u32 %s916, 4
          %s961 = int_to_ptr.vmem [resolvable:$true] %s960
          %963 = dma.vmem_to_hbm [thread:$0]  %s961, 16, %s958, %s914
        $region60: #{vae_forward.1} parent=47 // pred_fallthru
          _
        // Predicated region
        $region61: #{vae_forward.1} parent=47 // pred_check
          %p964 = pneg %p291
        $region62: #{vae_forward.1} parent=47 // pred_check_branch
          %966 = sbr.rel (%p964) target = $region64
        $region63: #{vae_forward.1} parent=47 // pred_region
          %s968 = ssub.s32 16, 16
          %969 = vsyncadd %s918, %s968
          %s970 = smul.addr %s33, 16
          %s971 = scalar_lea.hbm %s10, %s970
          %s973 = sshll.u32 %s920, 4
          %s974 = int_to_ptr.vmem [resolvable:$true] %s973
          %976 = dma.vmem_to_hbm [thread:$0]  %s974, 16, %s971, %s918
        $region64: #{vae_forward.1} parent=47 // pred_fallthru
          _
        // Predicated region
        $region65: #{vae_forward.1} parent=47 // pred_check
          %p977 = pneg %p317
        $region66: #{vae_forward.1} parent=47 // pred_check_branch
          %979 = sbr.rel (%p977) target = $region68
        $region67: #{vae_forward.1} parent=47 // pred_region
          _
        $region68: #{vae_forward.1} parent=47 // pred_fallthru
          _
      $region48: #{vae_forward.1} parent=5 // pred_fallthru
        _
      %p980 = scmp.le.s32.totalorder 2, %s28
      // Predicated region
      $region69: #{vae_forward.1} parent=5 // pred_check
        %p981 = pneg %p980
      $region70: #{vae_forward.1} parent=5 // pred_check_branch
        %983 = sbr.rel (%p981) target = $region72
      $region71: #{vae_forward.1} parent=5 // pred_region
        %s984 = ssub.s32 %s28, 2
        // Predicated region
        $region73: #{vae_forward.1} parent=71 // pred_check
          %p985 = pneg %p219
        $region74: #{vae_forward.1} parent=71 // pred_check_branch
          %987 = sbr.rel (%p985) target = $region76
        $region75: #{vae_forward.1} parent=71 // pred_region
          %s988 = sand.u32 %s204, 1
          %s989 = scalar_lea.sflag [#allocation4], %s988
          %s990 = sand.u32 %s204, 1
          %s991 = smul.addr %s990, 4
          %s992 = scalar_lea.vmem [#allocation3], %s991
          %993 = dma.done %s989, 64
        $region76: #{vae_forward.1} parent=71 // pred_fallthru
          _
        // Predicated region
        $region77: #{vae_forward.1} parent=71 // pred_check
          %p994 = pneg %p245
        $region78: #{vae_forward.1} parent=71 // pred_check_branch
          %996 = sbr.rel (%p994) target = $region80
        $region79: #{vae_forward.1} parent=71 // pred_region
          %s997 = sand.u32 %s34, 1
          %s998 = scalar_lea.sflag [#allocation6], %s997
          %s999 = sand.u32 %s230, 1
          %s1000 = scalar_lea.vmem [#allocation5], %s999
          %1001 = dma.done %s998, 16
        $region80: #{vae_forward.1} parent=71 // pred_fallthru
          _
        // Predicated region
        $region81: #{vae_forward.1} parent=71 // pred_check
          %p1002 = pneg %p271
        $region82: #{vae_forward.1} parent=71 // pred_check_branch
          %1004 = sbr.rel (%p1002) target = $region84
        $region83: #{vae_forward.1} parent=71 // pred_region
          %s1005 = sand.u32 %s34, 1
          %s1006 = scalar_lea.sflag [#allocation6], %s1005
          %s1007 = sand.u32 %s256, 1
          %s1008 = scalar_lea.vmem [#allocation7], %s1007
          %1009 = dma.done %s1006, 16
        $region84: #{vae_forward.1} parent=71 // pred_fallthru
          _
        // Predicated region
        $region85: #{vae_forward.1} parent=71 // pred_check
          %p1010 = pneg %p297
        $region86: #{vae_forward.1} parent=71 // pred_check_branch
          %1012 = sbr.rel (%p1010) target = $region88
        $region87: #{vae_forward.1} parent=71 // pred_region
          %s1013 = sand.u32 %s282, 1
          %s1014 = scalar_lea.sflag [#allocation9], %s1013
          %s1015 = sand.u32 %s282, 1
          %s1016 = scalar_lea.vmem [#allocation8], %s1015
          %1017 = dma.done %s1014, 16
        $region88: #{vae_forward.1} parent=71 // pred_fallthru
          _
        // Predicated region
        $region89: #{vae_forward.1} parent=71 // pred_check
          %p1018 = pneg %p323
        $region90: #{vae_forward.1} parent=71 // pred_check_branch
          %1020 = sbr.rel (%p1018) target = $region92
        $region91: #{vae_forward.1} parent=71 // pred_region
          %p1021 = scmp.lt.s32.totalorder %s34, 1
          %s1022 = scalar_select %p1021, %s34, 1
          %s1023 = smul.addr %s1022, 8
          %s1024 = scalar_lea.vmem %s11, %s1023
        $region92: #{vae_forward.1} parent=71 // pred_fallthru
          _
      $region72: #{vae_forward.1} parent=5 // pred_fallthru
        _
    $region6: #{vae_forward.1} parent=1 // loop_footer
      %s32 = sadd.s32 1, %s28
    $region7: #{vae_forward.1} parent=1 // loop_footer_branch
      %27 = sbr.rel target = $region3
    $region8: #{vae_forward.1} parent=1 // loop_exit
      _
    %1025 = vsyncpa [#allocation4], 1
    %s1026 = scalar_lea.sflag [#allocation4], 1
    %1027 = vsyncpa %s1026, 1
    %1028 = vsyncpa [#allocation6], 1
    %s1029 = scalar_lea.sflag [#allocation6], 1
    %1030 = vsyncpa %s1029, 1
    %1031 = vsyncpa [#allocation9], 1
    %s1032 = scalar_lea.sflag [#allocation9], 1
    %1033 = vsyncpa %s1032, 1

</llo_original>
